<compile_context>
chip_gen: v7x
topology: tpu7x:2x2x1
jax: 0.10.0
libtpu: 0.0.40
codegen_flags: <defaults>
</compile_context>

<pallas_src>
import jax
import jax.numpy as jnp
from jax.experimental import pallas as pl
from jax.experimental.pallas import tpu as pltpu


def _round_up(x, m):
    return (x + m - 1) // m * m


def _const_spec(shape, index_map):
    """BlockSpec for a grid-invariant operand; single-buffered when supported."""
    try:
        return pl.BlockSpec(shape, index_map, pipeline_mode=pl.Buffered(1))
    except TypeError:  # older jax without pipeline_mode kwarg
        return pl.BlockSpec(shape, index_map)


def _make_kernel(c_out_split, mxu_dtype, identity_skip):
    """Kernel on one (C, tile_L) slab: channels = sublane axis, L = lane axis.

    BN is applied as f32 scale*y + shift after each matmul (accurate even with
    bf16 MXU operands)."""
    if identity_skip:
        def kernel(x_ref, w1_ref, s1_ref, sh1_ref, w2_ref, s2_ref, bias_ref, o_ref):
            x = x_ref[...]                                          # (C_in, tL) f32
            y1 = jnp.dot(w1_ref[...], x.astype(mxu_dtype),
                         preferred_element_type=jnp.float32)        # (C_mid, tL)
            h = jnp.maximum(y1 * s1_ref[...] + sh1_ref[...], 0.0)   # BN1 + ReLU
            r = jnp.dot(w2_ref[...], h.astype(mxu_dtype),
                        preferred_element_type=jnp.float32)         # (C_out, tL)
            o_ref[...] = jnp.maximum(
                x + r * s2_ref[...] + bias_ref[...], 0.0).astype(o_ref.dtype)
        return kernel

    def kernel(x_ref, wcat_ref, s1_ref, sh1_ref, w2_ref, s2_ref, bias_ref, o_ref):
        xm = x_ref[...].astype(mxu_dtype)                            # (C_in, tL)
        # Fused skip-conv + conv1: one MXU matmul with concatenated weights.
        y = jnp.dot(wcat_ref[...], xm,
                    preferred_element_type=jnp.float32)              # (C_out_p+C_mid_p, tL)
        skip = y[:c_out_split, :]                   # c_out_split % 8 == 0 -> aligned slice
        h = jnp.maximum(y[c_out_split:, :] * s1_ref[...] + sh1_ref[...], 0.0)
        r = jnp.dot(w2_ref[...], h.astype(mxu_dtype),
                    preferred_element_type=jnp.float32)              # (C_out_p, tL)
        o_ref[...] = jnp.maximum(
            skip + r * s2_ref[...] + bias_ref[...], 0.0).astype(o_ref.dtype)
    return kernel


def encoder_forward(x_ncl, params, *, use_bf16=True, out_dtype=jnp.float32,
                    max_tile_l=None):
    """x_ncl: (N, C_in, L) float32.  Returns (N, C_out, L) in out_dtype."""
    N, C_in, L = x_ncl.shape
    C_mid = params["w1"].shape[0]
    C_out = params["w2"].shape[0]
    identity_skip = "w_skip" not in params
    # TODO(synk): identity-skip detection mirrors the PyTorch Encoder (Identity
    # iff in_channels == out_channels); a projection with equal channels would
    # need params["w_skip"] to be supplied.

    mxu_dtype = jnp.bfloat16 if use_bf16 else jnp.float32
    mxu_bytes = 2 if use_bf16 else 4
    out_bytes = jnp.dtype(out_dtype).itemsize

    # ---- eval-mode BatchNorm -> per-channel f32 scale & shift ----------------
    eps = params["eps"]
    s1 = params["bn1_gamma"] / jnp.sqrt(params["bn1_var"] + eps)
    sh1 = params["bn1_beta"] - params["bn1_mean"] * s1
    s2 = params["bn2_gamma"] / jnp.sqrt(params["bn2_var"] + eps)
    sh2 = params["bn2_beta"] - params["bn2_mean"] * s2

    if identity_skip:
        C_out_p, C_mid_p = C_out, C_mid            # no in-kernel sublane split
        w_first = params["w1"].astype(mxu_dtype)                       # (C_mid, C_in)
        w2a = params["w2"].astype(mxu_dtype)                           # (C_out, C_mid)
        s1c = s1[:, None].astype(jnp.float32)
        sh1c = sh1[:, None].astype(jnp.float32)
        s2c = s2[:, None].astype(jnp.float32)
        bias = sh2[:, None].astype(jnp.float32)
    else:
        # Pad channel counts to multiples of 8 so the y[:C_out_p] / y[C_out_p:]
        # split is (8,128)-tile aligned (no per-step VMEM relayout copies).
        C_out_p = _round_up(C_out, 8)
        C_mid_p = _round_up(C_mid, 8)

        def padr(a, rows):
            return jnp.pad(a, ((0, rows - a.shape[0]),) + ((0, 0),) * (a.ndim - 1))

        w_first = jnp.concatenate(
            [padr(params["w_skip"], C_out_p), padr(params["w1"], C_mid_p)],
            axis=0).astype(mxu_dtype)                                  # (C_out_p+C_mid_p, C_in)
        w2a = jnp.pad(params["w2"],
                      ((0, C_out_p - C_out), (0, C_mid_p - C_mid))).astype(mxu_dtype)
        s1c = padr(s1[:, None], C_mid_p).astype(jnp.float32)
        sh1c = padr(sh1[:, None], C_mid_p).astype(jnp.float32)
        s2c = padr(s2[:, None], C_out_p).astype(jnp.float32)
        bias = padr((params["b_skip"] + sh2)[:, None], C_out_p).astype(jnp.float32)

    wcat_rows = w_first.shape[0]

    # ---- tile_l selection -----------------------------------------------------
    lane_mult = 128 if L <= 128 else 256           # 256 fills v6e/v7x 2x256 MXU
    # Target >= ~512 KiB of x per grid step (amortize ~0.35 us/step overhead).
    want_l = max(512, (512 * 1024) // (4 * C_in))
    tile_l = min(_round_up(want_l, lane_mult), _round_up(L, lane_mult))
    if max_tile_l is not None:
        tile_l = min(tile_l, max(_round_up(max_tile_l, lane_mult), lane_mult))

    # Per-generation VMEM budget (v5e/v6e 128 MiB, v7x 64 MiB per TC).
    try:
        vmem_cap = int(pltpu.get_tpu_info().vmem_capacity_bytes)
    except Exception:
        vmem_cap = 64 * 1024 * 1024                # conservative (v7x per-core)
    budget = int(vmem_cap * 0.7)

    def step_vmem(tl):
        x_b = 2 * C_in * tl * 4                          # double-buffered input slab
        o_b = 2 * C_out_p * tl * out_bytes               # double-buffered output slab
        w_b = (wcat_rows * C_in + C_out_p * C_mid_p) * mxu_bytes   # single-buffered
        vec_b = 2 * (_round_up(C_mid_p, 8) + _round_up(C_out_p, 8)) * 128 * 4
        inter = (wcat_rows + C_mid_p + C_out_p) * tl * 4           # y / h / r values
        return x_b + o_b + w_b + vec_b + inter

    while tile_l > lane_mult and step_vmem(tile_l) > budget:
        tile_l = max(lane_mult, _round_up(tile_l // 2, lane_mult))

    L_pad = _round_up(L, tile_l)

    # v7x has 2 TensorCores: make sure the parallel grid has >= 2 steps if possible.
    if N * (L_pad // tile_l) < 2 and tile_l > 128:
        half = max(128, _round_up(tile_l // 2, 128))
        if _round_up(L, half) // half >= 2:
            tile_l = half
            L_pad = _round_up(L, half)

    if L_pad != L:
        x_ncl = jnp.pad(x_ncl, ((0, 0), (0, 0), (0, L_pad - L)))

    # ---- cost estimate & VMEM limit -------------------------------------------
    flops = 2 * N * L_pad * (wcat_rows * C_in + C_out_p * C_mid_p)
    bytes_accessed = (N * C_in * L_pad * 4
                      + N * C_out_p * L_pad * out_bytes
                      + (wcat_rows * C_in + C_out_p * C_mid_p) * mxu_bytes)
    cost = pl.CostEstimate(flops=flops, transcendentals=0,
                           bytes_accessed=bytes_accessed)

    need = step_vmem(tile_l)
    vmem_limit = int(min(int(vmem_cap * 0.9), max(32 * 1024 * 1024, int(need * 1.5))))

    # ---- pallas_call -----------------------------------------------------------
    kernel = _make_kernel(C_out_p, mxu_dtype, identity_skip)
    full = lambda n, l: (0, 0)                      # grid-invariant operands

    out = pl.pallas_call(
        kernel,
        out_shape=jax.ShapeDtypeStruct((N, C_out_p, L_pad), out_dtype),
        grid_spec=pltpu.PrefetchScalarGridSpec(
            num_scalar_prefetch=0,
            grid=(N, L_pad // tile_l),
            in_specs=[
                pl.BlockSpec((None, C_in, tile_l), lambda n, l: (n, 0, l)),   # x slab
                _const_spec((wcat_rows, C_in), full),                         # W_cat / W1
                _const_spec((C_mid_p, 1), full),                              # s1
                _const_spec((C_mid_p, 1), full),                              # sh1
                _const_spec((C_out_p, C_mid_p), full),                        # W2
                _const_spec((C_out_p, 1), full),                              # s2
                _const_spec((C_out_p, 1), full),                              # bias
            ],
            out_specs=pl.BlockSpec((None, C_out_p, tile_l), lambda n, l: (n, 0, l)),
        ),
        compiler_params=pltpu.CompilerParams(
            dimension_semantics=("parallel", "parallel"),
            vmem_limit_bytes=vmem_limit),
        cost_estimate=cost,
    )(x_ncl, w_first, s1c, sh1c, w2a, s2c, bias)

    if C_out_p != C_out or L_pad != L:
        out = out[:, :C_out, :L]
    return out


def make_params(key, C_in, C_out, eps=1e-5):
    """Deterministic synthetic parameters matching the PyTorch module layout:
       Conv1d weights as (out_ch, in_ch); BatchNorm in eval mode."""
    C_mid = C_in // 2
    ks = jax.random.split(key, 12)
    p = dict(eps=jnp.float32(eps))
    if C_in != C_out:
        p["w_skip"] = 0.1 * jax.random.normal(ks[0], (C_out, C_in), jnp.float32)
        p["b_skip"] = 0.1 * jax.random.normal(ks[1], (C_out,), jnp.float32)
    p["w1"] = 0.1 * jax.random.normal(ks[2], (C_mid, C_in), jnp.float32)
    p["w2"] = 0.1 * jax.random.normal(ks[3], (C_out, C_mid), jnp.float32)
    p["bn1_gamma"] = 1.0 + 0.1 * jax.random.normal(ks[4], (C_mid,), jnp.float32)
    p["bn1_beta"] = 0.1 * jax.random.normal(ks[5], (C_mid,), jnp.float32)
    p["bn1_mean"] = 0.1 * jax.random.normal(ks[6], (C_mid,), jnp.float32)
    p["bn1_var"] = jnp.abs(1.0 + 0.1 * jax.random.normal(ks[7], (C_mid,), jnp.float32))
    p["bn2_gamma"] = 1.0 + 0.1 * jax.random.normal(ks[8], (C_out,), jnp.float32)
    p["bn2_beta"] = 0.1 * jax.random.normal(ks[9], (C_out,), jnp.float32)
    p["bn2_mean"] = 0.1 * jax.random.normal(ks[10], (C_out,), jnp.float32)
    p["bn2_var"] = jnp.abs(1.0 + 0.1 * jax.random.normal(ks[11], (C_out,), jnp.float32))
    return p


def encoder_reference(x, p):
    """Pure-JAX f32 reference of the same (eval-mode BN) forward pass, NCL."""
    def conv(w, z):
        return jnp.einsum('oi,nil->nol', w, z)

    def bn(z, g, b, m, v):
        s = g / jnp.sqrt(v + p["eps"])
        return z * s[None, :, None] + (b - m * s)[None, :, None]

    skip = conv(p["w_skip"], x) + p["b_skip"][None, :, None] if "w_skip" in p else x
    h = jnp.maximum(bn(conv(p["w1"], x), p["bn1_gamma"], p["bn1_beta"],
                       p["bn1_mean"], p["bn1_var"]), 0.0)
    r = bn(conv(p["w2"], h), p["bn2_gamma"], p["bn2_beta"],
           p["bn2_mean"], p["bn2_var"])
    return jnp.maximum(skip + r, 0.0)


if __name__ == "__main__":
    # TODO(synk): BatchNorm is folded in eval mode (running stats); PyTorch's
    # default training-mode batch statistics are not reproduced.
    key = jax.random.PRNGKey(0)
    kx, kp, kx2, kp2 = jax.random.split(key, 4)

    # Case 1: projection skip (in_channels != out_channels).
    N, C_in, C_out, L = 2, 8, 16, 16
    x = jax.random.normal(kx, (N, C_in, L), jnp.float32)
    params = make_params(kp, C_in, C_out)

    out_f32 = jax.block_until_ready(encoder_forward(x, params, use_bf16=False))
    out_bf16 = jax.block_until_ready(encoder_forward(x, params, use_bf16=True))
    out_bf16o = jax.block_until_ready(
        encoder_forward(x, params, use_bf16=True, out_dtype=jnp.bfloat16))
    ref = encoder_reference(x, params)
    assert out_f32.shape == (N, C_out, L)
    assert jnp.max(jnp.abs(out_f32 - ref)) < 1e-4
    assert jnp.max(jnp.abs(out_bf16 - ref)) < 5e-2          # bf16 MXU operands
    assert out_bf16o.dtype == jnp.bfloat16
    assert jnp.max(jnp.abs(out_bf16o.astype(jnp.float32) - ref)) < 1e-1

    # Case 2: identity skip (in_channels == out_channels).
    x2 = jax.random.normal(kx2, (N, C_in, L), jnp.float32)
    params2 = make_params(kp2, C_in, C_in)
    out2 = jax.block_until_ready(encoder_forward(x2, params2, use_bf16=False))
    ref2 = encoder_reference(x2, params2)
    assert out2.shape == (N, C_in, L)
    assert jnp.max(jnp.abs(out2 - ref2)) < 1e-4

    print("KERNEL_OK")
</pallas_src>

<mosaic_0001>
module attributes {stable_mosaic.version = 11 : i64} {
  func.func @kernel(%arg0: i32, %arg1: i32, %arg2: memref<1x8x128xf32, #tpu.memory_space<vmem>>, %arg3: memref<24x8xf32, #tpu.memory_space<vmem>>, %arg4: memref<8x1xf32, #tpu.memory_space<vmem>>, %arg5: memref<8x1xf32, #tpu.memory_space<vmem>>, %arg6: memref<16x8xf32, #tpu.memory_space<vmem>>, %arg7: memref<16x1xf32, #tpu.memory_space<vmem>>, %arg8: memref<16x1xf32, #tpu.memory_space<vmem>>, %arg9: memref<1x16x128xf32, #tpu.memory_space<vmem>>) attributes {dimension_semantics = [#tpu.dimension_semantics<parallel>, #tpu.dimension_semantics<parallel>], iteration_bounds = array<i64: 2, 1>, scalar_prefetch = 0 : i64, scratch_operands = 0 : i64, tpu.core_type = #tpu.core_type<tc>, window_params = [{transform_indices = @transform_0, window_bounds = array<i64: 1, 8, 128>}, {pipeline_mode = #tpu.pipeline_mode<synchronous>, transform_indices = @transform_1, window_bounds = array<i64: 24, 8>}, {pipeline_mode = #tpu.pipeline_mode<synchronous>, transform_indices = @transform_2, window_bounds = array<i64: 8, 1>}, {pipeline_mode = #tpu.pipeline_mode<synchronous>, transform_indices = @transform_3, window_bounds = array<i64: 8, 1>}, {pipeline_mode = #tpu.pipeline_mode<synchronous>, transform_indices = @transform_4, window_bounds = array<i64: 16, 8>}, {pipeline_mode = #tpu.pipeline_mode<synchronous>, transform_indices = @transform_5, window_bounds = array<i64: 16, 1>}, {pipeline_mode = #tpu.pipeline_mode<synchronous>, transform_indices = @transform_6, window_bounds = array<i64: 16, 1>}, {transform_indices = @transform_7, window_bounds = array<i64: 1, 16, 128>}]} {
    %c0 = arith.constant 0 : index
    %c0_0 = arith.constant 0 : index
    %c0_1 = arith.constant 0 : index
    %0 = vector.load %arg2[%c0, %c0_0, %c0_1] : memref<1x8x128xf32, #tpu.memory_space<vmem>>, vector<1x8x128xf32>
    %1 = vector.shape_cast %0 : vector<1x8x128xf32> to vector<8x128xf32>
    %c0_2 = arith.constant 0 : index
    %c0_3 = arith.constant 0 : index
    %2 = vector.load %arg3[%c0_2, %c0_3] : memref<24x8xf32, #tpu.memory_space<vmem>>, vector<24x8xf32>
    %cst = arith.constant dense<0.000000e+00> : vector<24x128xf32>
    %3 = tpu.matmul %2, %1, %cst {dimension_numbers = #tpu.dot_dimension_numbers<[1], [0], [0], [1], [0, 0, 1, 1], [], []>} : vector<24x8xf32>, vector<8x128xf32>, vector<24x128xf32> -> vector<24x128xf32>
    %4 = vector.extract_strided_slice %3 {offsets = [0, 0], sizes = [16, 128], strides = [1, 1]} : vector<24x128xf32> to vector<16x128xf32>
    %5 = vector.extract_strided_slice %3 {offsets = [16, 0], sizes = [8, 128], strides = [1, 1]} : vector<24x128xf32> to vector<8x128xf32>
    %c0_4 = arith.constant 0 : index
    %c0_5 = arith.constant 0 : index
    %6 = vector.load %arg4[%c0_4, %c0_5] : memref<8x1xf32, #tpu.memory_space<vmem>>, vector<8x1xf32>
    %7 = vector.broadcast %6 : vector<8x1xf32> to vector<8x128xf32>
    %8 = arith.mulf %5, %7 : vector<8x128xf32>
    %c0_6 = arith.constant 0 : index
    %c0_7 = arith.constant 0 : index
    %9 = vector.load %arg5[%c0_6, %c0_7] : memref<8x1xf32, #tpu.memory_space<vmem>>, vector<8x1xf32>
    %10 = vector.broadcast %9 : vector<8x1xf32> to vector<8x128xf32>
    %11 = arith.addf %8, %10 : vector<8x128xf32>
    %cst_8 = arith.constant 0.000000e+00 : f32
    %12 = vector.broadcast %cst_8 : f32 to vector<8x128xf32>
    %13 = arith.maximumf %11, %12 : vector<8x128xf32>
    %c0_9 = arith.constant 0 : index
    %c0_10 = arith.constant 0 : index
    %14 = vector.load %arg6[%c0_9, %c0_10] : memref<16x8xf32, #tpu.memory_space<vmem>>, vector<16x8xf32>
    %cst_11 = arith.constant dense<0.000000e+00> : vector<16x128xf32>
    %15 = tpu.matmul %14, %13, %cst_11 {dimension_numbers = #tpu.dot_dimension_numbers<[1], [0], [0], [1], [0, 0, 1, 1], [], []>} : vector<16x8xf32>, vector<8x128xf32>, vector<16x128xf32> -> vector<16x128xf32>
    %c0_12 = arith.constant 0 : index
    %c0_13 = arith.constant 0 : index
    %16 = vector.load %arg7[%c0_12, %c0_13] : memref<16x1xf32, #tpu.memory_space<vmem>>, vector<16x1xf32>
    %17 = vector.broadcast %16 : vector<16x1xf32> to vector<16x128xf32>
    %18 = arith.mulf %15, %17 : vector<16x128xf32>
    %19 = arith.addf %4, %18 : vector<16x128xf32>
    %c0_14 = arith.constant 0 : index
    %c0_15 = arith.constant 0 : index
    %20 = vector.load %arg8[%c0_14, %c0_15] : memref<16x1xf32, #tpu.memory_space<vmem>>, vector<16x1xf32>
    %21 = vector.broadcast %20 : vector<16x1xf32> to vector<16x128xf32>
    %22 = arith.addf %19, %21 : vector<16x128xf32>
    %cst_16 = arith.constant 0.000000e+00 : f32
    %23 = vector.broadcast %cst_16 : f32 to vector<16x128xf32>
    %24 = arith.maximumf %22, %23 : vector<16x128xf32>
    %c0_17 = arith.constant 0 : index
    %c0_18 = arith.constant 0 : index
    %c0_19 = arith.constant 0 : index
    %25 = vector.load %arg9[%c0_17, %c0_18, %c0_19] : memref<1x16x128xf32, #tpu.memory_space<vmem>>, vector<1x16x128xf32>
    %26 = vector.shape_cast %25 : vector<1x16x128xf32> to vector<16x128xf32>
    %27 = vector.shape_cast %24 : vector<16x128xf32> to vector<1x16x128xf32>
    tpu.vector_store %arg9[%c0_17, %c0_18, %c0_19], %27 {strides = array<i32>} : memref<1x16x128xf32, #tpu.memory_space<vmem>>, vector<1x16x128xf32>,
    return
  }
  func.func @transform_0(%arg0: i32, %arg1: i32) -> (i32, i32, i32) {
    %c0_i32 = arith.constant 0 : i32
    %c0_i32_0 = arith.constant 0 : i32
    return %arg0, %c0_i32, %arg1 : i32, i32, i32
  }
  func.func @transform_1(%arg0: i32, %arg1: i32) -> (i32, i32) {
    %c0_i32 = arith.constant 0 : i32
    %c0_i32_0 = arith.constant 0 : i32
    %c0_i32_1 = arith.constant 0 : i32
    return %c0_i32, %c0_i32_0 : i32, i32
  }
  func.func @transform_2(%arg0: i32, %arg1: i32) -> (i32, i32) {
    %c0_i32 = arith.constant 0 : i32
    %c0_i32_0 = arith.constant 0 : i32
    %c0_i32_1 = arith.constant 0 : i32
    return %c0_i32, %c0_i32_0 : i32, i32
  }
  func.func @transform_3(%arg0: i32, %arg1: i32) -> (i32, i32) {
    %c0_i32 = arith.constant 0 : i32
    %c0_i32_0 = arith.constant 0 : i32
    %c0_i32_1 = arith.constant 0 : i32
    return %c0_i32, %c0_i32_0 : i32, i32
  }
  func.func @transform_4(%arg0: i32, %arg1: i32) -> (i32, i32) {
    %c0_i32 = arith.constant 0 : i32
    %c0_i32_0 = arith.constant 0 : i32
    %c0_i32_1 = arith.constant 0 : i32
    return %c0_i32, %c0_i32_0 : i32, i32
  }
  func.func @transform_5(%arg0: i32, %arg1: i32) -> (i32, i32) {
    %c0_i32 = arith.constant 0 : i32
    %c0_i32_0 = arith.constant 0 : i32
    %c0_i32_1 = arith.constant 0 : i32
    return %c0_i32, %c0_i32_0 : i32, i32
  }
  func.func @transform_6(%arg0: i32, %arg1: i32) -> (i32, i32) {
    %c0_i32 = arith.constant 0 : i32
    %c0_i32_0 = arith.constant 0 : i32
    %c0_i32_1 = arith.constant 0 : i32
    return %c0_i32, %c0_i32_0 : i32, i32
  }
  func.func @transform_7(%arg0: i32, %arg1: i32) -> (i32, i32, i32) {
    %c0_i32 = arith.constant 0 : i32
    %c0_i32_0 = arith.constant 0 : i32
    return %arg0, %c0_i32, %arg1 : i32, i32, i32
  }
}

</mosaic_0001>

<llo_original>
// kernel: tpu_custom_call.1
$region0: #{tpu_custom_call.1}
  #allocation0 [shape = 'u32[]', space=smem, size = 0x4, offset = 0x4, fixed_abs, tag = 'smem constant byte address 0x4 - core index']
  #allocation1 [shape = 'u32[144,128]{1,0:T(1,128)}', space=vmem, size = 0x12000, scoped, tag = 'internal scratch']
  %s0 = inlined_call_operand.vmem [shape: f32[2,8,128], index: 0, kind: input, shape index: {}]
  %s1 = inlined_call_operand.vmem [shape: f32[24,8], index: 1, kind: input, shape index: {}]
  %s2 = inlined_call_operand.vmem [shape: f32[8,1], index: 2, kind: input, shape index: {}]
  %s3 = inlined_call_operand.vmem [shape: f32[8,1], index: 3, kind: input, shape index: {}]
  %s4 = inlined_call_operand.vmem [shape: f32[16,8], index: 4, kind: input, shape index: {}]
  %s5 = inlined_call_operand.vmem [shape: f32[16,1], index: 5, kind: input, shape index: {}]
  %s6 = inlined_call_operand.vmem [shape: f32[16,1], index: 6, kind: input, shape index: {}]
  %s7 = inlined_call_operand.hbm [shape: f32[2,16,128], index: 7, kind: output, shape index: {}]
  %s8 = sld [smem:[#allocation0]]
  $region61: #{tpu_custom_call.1} parent=0
    _
  %s10 = ssub.s32 1, %s8
  %s11 = scalar_select 0, %s10, %s8
  $region1: #{tpu_custom_call.1} parent=0
    #allocation2 [shape = 'u8[16384]{0}', space=vmem, size = 0x4000, scoped, tag = 'output window, operand 0']
    #allocation3 [shape = 's32[2]{0}', space=sflag, size = 0x8, scoped, tag = 'scoped memory for tpu_custom_call.1']
    %12 = vsyncpa [#allocation3], 0
    %s13 = scalar_lea.sflag [#allocation3], 1
    %14 = vsyncpa %s13, 0
    loop: start=0, step=1, limit=4
    $region2: #{tpu_custom_call.1} parent=1 // loop_pre_header
      _
    $region3: #{tpu_custom_call.1} parent=1 // loop_header
      %s16 = sphi 0, %s20
      %p17 = scmp.ge.s32.totalorder %s16, 4
      %s23 = sphi 0, %s35
      %s24 = sphi 0, %s31
      %s25 = sphi 0, %s23
      %s26 = sphi 0, %s24
      %s27 = sphi 0, %s25
      %s28 = sphi 0, %s26
      %s40 = sphi 0, %s42
      %s43 = sphi 0, %s40
      %s44 = sphi 0, %s43
      %s60 = sphi 0, %s44
      %s64 = sphi 0, %s64
      %s66 = sphi 0, %s64
      %s67 = sphi 0, %s66
      %s81 = sphi 0, %s67
      %s85 = sphi 0, %s85
      %s87 = sphi 0, %s85
      %s88 = sphi 0, %s87
      %s102 = sphi 0, %s88
      %s106 = sphi 0, %s106
      %s108 = sphi 0, %s106
      %s109 = sphi 0, %s108
      %s123 = sphi 0, %s109
      %s127 = sphi 0, %s127
      %s129 = sphi 0, %s127
      %s130 = sphi 0, %s129
      %s144 = sphi 0, %s130
      %s148 = sphi 0, %s148
      %s150 = sphi 0, %s148
      %s151 = sphi 0, %s150
      %s165 = sphi 0, %s151
      %s169 = sphi 0, %s169
      %s171 = sphi 0, %s169
      %s172 = sphi 0, %s171
      %s186 = sphi 0, %s172
      %s194 = sphi 0, %s196
      %s197 = sphi 0, %s194
      %s198 = sphi 0, %s197
      %s214 = sphi 0, %s198
    $region4: #{tpu_custom_call.1} parent=1 // loop_header_branch
      %19 = sbr.rel (%p17) target = $region8
    $region5: #{tpu_custom_call.1} parent=1 // loop_body
      %s21 = ssub.s32 %s16, 1
      %s22 = ssub.s32 %s16, 2
      %s29 = sadd.s32 1, %s24
      %p30 = scmp.ge.s32.totalorder %s29, 1
      %s31 = scalar_select %p30, 0, %s29
      %s32 = sadd.s32 1, %s23
      %s33 = scalar_select %p30, %s32, %s23
      %p34 = scmp.ge.s32.totalorder %s33, 2
      %s35 = scalar_select %p34, 0, %s33
      %s36 = ssub.s32 %s23, %s35
      %s37 = ssub.s32 %s24, %s31
      %s38 = sor.u32 %s36, %s37
      %p39 = scmp.eq.s32.totalorder %s38, 0
      %s41 = sadd.s32 %s40, 1
      %s42 = scalar_select %p39, %s40, %s41
      %p45 = pneg %p39
      %p46 = scmp.eq.s32.totalorder %s16, 1
      %p47 = por %p45, %p46
      %p48 = scmp.ne.s32.totalorder %s40, %s43
      %p49 = scmp.eq.s32.totalorder %s16, 0
      %p50 = por %p48, %p49
      %p51 = scmp.ne.s32.totalorder %s40, %s43
      %p52 = scmp.eq.s32.totalorder %s21, 1
      %p53 = por %p51, %p52
      %p54 = scmp.ne.s32.totalorder %s43, %s44
      %p55 = scmp.eq.s32.totalorder %s21, 0
      %p56 = por %p54, %p55
      %p57 = scmp.ne.s32.totalorder %s43, %s44
      %p58 = scmp.eq.s32.totalorder %s22, 1
      %p59 = por %p57, %p58
      %p61 = scmp.ne.s32.totalorder %s44, %s60
      %p62 = scmp.eq.s32.totalorder %s22, 0
      %p63 = por %p61, %p62
      %s65 = sadd.s32 %s64, 1
      %p68 = scmp.eq.s32.totalorder %s16, 1
      %p69 = scmp.ne.s32.totalorder %s64, %s66
      %p70 = scmp.eq.s32.totalorder %s16, 0
      %p71 = por %p69, %p70
      %p72 = scmp.ne.s32.totalorder %s64, %s66
      %p73 = scmp.eq.s32.totalorder %s21, 1
      %p74 = por %p72, %p73
      %p75 = scmp.ne.s32.totalorder %s66, %s67
      %p76 = scmp.eq.s32.totalorder %s21, 0
      %p77 = por %p75, %p76
      %p78 = scmp.ne.s32.totalorder %s66, %s67
      %p79 = scmp.eq.s32.totalorder %s22, 1
      %p80 = por %p78, %p79
      %p82 = scmp.ne.s32.totalorder %s67, %s81
      %p83 = scmp.eq.s32.totalorder %s22, 0
      %p84 = por %p82, %p83
      %s86 = sadd.s32 %s85, 1
      %p89 = scmp.eq.s32.totalorder %s16, 1
      %p90 = scmp.ne.s32.totalorder %s85, %s87
      %p91 = scmp.eq.s32.totalorder %s16, 0
      %p92 = por %p90, %p91
      %p93 = scmp.ne.s32.totalorder %s85, %s87
      %p94 = scmp.eq.s32.totalorder %s21, 1
      %p95 = por %p93, %p94
      %p96 = scmp.ne.s32.totalorder %s87, %s88
      %p97 = scmp.eq.s32.totalorder %s21, 0
      %p98 = por %p96, %p97
      %p99 = scmp.ne.s32.totalorder %s87, %s88
      %p100 = scmp.eq.s32.totalorder %s22, 1
      %p101 = por %p99, %p100
      %p103 = scmp.ne.s32.totalorder %s88, %s102
      %p104 = scmp.eq.s32.totalorder %s22, 0
      %p105 = por %p103, %p104
      %s107 = sadd.s32 %s106, 1
      %p110 = scmp.eq.s32.totalorder %s16, 1
      %p111 = scmp.ne.s32.totalorder %s106, %s108
      %p112 = scmp.eq.s32.totalorder %s16, 0
      %p113 = por %p111, %p112
      %p114 = scmp.ne.s32.totalorder %s106, %s108
      %p115 = scmp.eq.s32.totalorder %s21, 1
      %p116 = por %p114, %p115
      %p117 = scmp.ne.s32.totalorder %s108, %s109
      %p118 = scmp.eq.s32.totalorder %s21, 0
      %p119 = por %p117, %p118
      %p120 = scmp.ne.s32.totalorder %s108, %s109
      %p121 = scmp.eq.s32.totalorder %s22, 1
      %p122 = por %p120, %p121
      %p124 = scmp.ne.s32.totalorder %s109, %s123
      %p125 = scmp.eq.s32.totalorder %s22, 0
      %p126 = por %p124, %p125
      %s128 = sadd.s32 %s127, 1
      %p131 = scmp.eq.s32.totalorder %s16, 1
      %p132 = scmp.ne.s32.totalorder %s127, %s129
      %p133 = scmp.eq.s32.totalorder %s16, 0
      %p134 = por %p132, %p133
      %p135 = scmp.ne.s32.totalorder %s127, %s129
      %p136 = scmp.eq.s32.totalorder %s21, 1
      %p137 = por %p135, %p136
      %p138 = scmp.ne.s32.totalorder %s129, %s130
      %p139 = scmp.eq.s32.totalorder %s21, 0
      %p140 = por %p138, %p139
      %p141 = scmp.ne.s32.totalorder %s129, %s130
      %p142 = scmp.eq.s32.totalorder %s22, 1
      %p143 = por %p141, %p142
      %p145 = scmp.ne.s32.totalorder %s130, %s144
      %p146 = scmp.eq.s32.totalorder %s22, 0
      %p147 = por %p145, %p146
      %s149 = sadd.s32 %s148, 1
      %p152 = scmp.eq.s32.totalorder %s16, 1
      %p153 = scmp.ne.s32.totalorder %s148, %s150
      %p154 = scmp.eq.s32.totalorder %s16, 0
      %p155 = por %p153, %p154
      %p156 = scmp.ne.s32.totalorder %s148, %s150
      %p157 = scmp.eq.s32.totalorder %s21, 1
      %p158 = por %p156, %p157
      %p159 = scmp.ne.s32.totalorder %s150, %s151
      %p160 = scmp.eq.s32.totalorder %s21, 0
      %p161 = por %p159, %p160
      %p162 = scmp.ne.s32.totalorder %s150, %s151
      %p163 = scmp.eq.s32.totalorder %s22, 1
      %p164 = por %p162, %p163
      %p166 = scmp.ne.s32.totalorder %s151, %s165
      %p167 = scmp.eq.s32.totalorder %s22, 0
      %p168 = por %p166, %p167
      %s170 = sadd.s32 %s169, 1
      %p173 = scmp.eq.s32.totalorder %s16, 1
      %p174 = scmp.ne.s32.totalorder %s169, %s171
      %p175 = scmp.eq.s32.totalorder %s16, 0
      %p176 = por %p174, %p175
      %p177 = scmp.ne.s32.totalorder %s169, %s171
      %p178 = scmp.eq.s32.totalorder %s21, 1
      %p179 = por %p177, %p178
      %p180 = scmp.ne.s32.totalorder %s171, %s172
      %p181 = scmp.eq.s32.totalorder %s21, 0
      %p182 = por %p180, %p181
      %p183 = scmp.ne.s32.totalorder %s171, %s172
      %p184 = scmp.eq.s32.totalorder %s22, 1
      %p185 = por %p183, %p184
      %p187 = scmp.ne.s32.totalorder %s172, %s186
      %p188 = scmp.eq.s32.totalorder %s22, 0
      %p189 = por %p187, %p188
      %s190 = ssub.s32 %s23, %s35
      %s191 = ssub.s32 %s24, %s31
      %s192 = sor.u32 %s190, %s191
      %p193 = scmp.eq.s32.totalorder %s192, 0
      %s195 = sadd.s32 %s194, 1
      %s196 = scalar_select %p193, %s194, %s195
      %p199 = pneg %p193
      %p200 = scmp.eq.s32.totalorder %s16, 1
      %p201 = por %p199, %p200
      %p202 = scmp.ne.s32.totalorder %s194, %s197
      %p203 = scmp.eq.s32.totalorder %s16, 0
      %p204 = por %p202, %p203
      %p205 = scmp.ne.s32.totalorder %s194, %s197
      %p206 = scmp.eq.s32.totalorder %s21, 1
      %p207 = por %p205, %p206
      %p208 = scmp.ne.s32.totalorder %s197, %s198
      %p209 = scmp.eq.s32.totalorder %s21, 0
      %p210 = por %p208, %p209
      %p211 = scmp.ne.s32.totalorder %s197, %s198
      %p212 = scmp.eq.s32.totalorder %s22, 1
      %p213 = por %p211, %p212
      %p215 = scmp.ne.s32.totalorder %s198, %s214
      %p216 = scmp.eq.s32.totalorder %s22, 0
      %p217 = por %p215, %p216
      %p218 = scmp.le.s32.totalorder 1, %s16
      %p219 = scmp.lt.s32.totalorder %s16, 3
      %p220 = pnand %p218, %p219
      %p221 = pneg %p220
      // Predicated region
      $region9: #{tpu_custom_call.1} parent=5 // pred_check
        _
      $region10: #{tpu_custom_call.1} parent=5 // pred_check_branch
        %223 = sbr.rel (%p220) target = $region12
      $region11: #{tpu_custom_call.1} parent=5 // pred_region
        %s224 = ssub.s32 %s16, 1
        // Predicated region
        $region13: #{tpu_custom_call.1} parent=11 // pred_check
          %p225 = pneg %p77
        $region14: #{tpu_custom_call.1} parent=11 // pred_check_branch
          %227 = sbr.rel (%p225) target = $region16
        $region15: #{tpu_custom_call.1} parent=11 // pred_region
          _
        $region16: #{tpu_custom_call.1} parent=11 // pred_fallthru
          _
        // Predicated region
        $region17: #{tpu_custom_call.1} parent=11 // pred_check
          %p228 = pneg %p98
        $region18: #{tpu_custom_call.1} parent=11 // pred_check_branch
          %230 = sbr.rel (%p228) target = $region20
        $region19: #{tpu_custom_call.1} parent=11 // pred_region
          _
        $region20: #{tpu_custom_call.1} parent=11 // pred_fallthru
          _
        // Predicated region
        $region21: #{tpu_custom_call.1} parent=11 // pred_check
          %p231 = pneg %p119
        $region22: #{tpu_custom_call.1} parent=11 // pred_check_branch
          %233 = sbr.rel (%p231) target = $region24
        $region23: #{tpu_custom_call.1} parent=11 // pred_region
          _
        $region24: #{tpu_custom_call.1} parent=11 // pred_fallthru
          _
        // Predicated region
        $region25: #{tpu_custom_call.1} parent=11 // pred_check
          %p234 = pneg %p140
        $region26: #{tpu_custom_call.1} parent=11 // pred_check_branch
          %236 = sbr.rel (%p234) target = $region28
        $region27: #{tpu_custom_call.1} parent=11 // pred_region
          _
        $region28: #{tpu_custom_call.1} parent=11 // pred_fallthru
          _
        // Predicated region
        $region29: #{tpu_custom_call.1} parent=11 // pred_check
          %p237 = pneg %p161
        $region30: #{tpu_custom_call.1} parent=11 // pred_check_branch
          %239 = sbr.rel (%p237) target = $region32
        $region31: #{tpu_custom_call.1} parent=11 // pred_region
          _
        $region32: #{tpu_custom_call.1} parent=11 // pred_fallthru
          _
        // Predicated region
        $region33: #{tpu_custom_call.1} parent=11 // pred_check
          %p240 = pneg %p182
        $region34: #{tpu_custom_call.1} parent=11 // pred_check_branch
          %242 = sbr.rel (%p240) target = $region36
        $region35: #{tpu_custom_call.1} parent=11 // pred_region
          _
        $region36: #{tpu_custom_call.1} parent=11 // pred_fallthru
          _
      $region12: #{tpu_custom_call.1} parent=5 // pred_fallthru
        _
      %p243 = scmp.lt.s32.totalorder %s16, 2
      // Predicated region
      $region37: #{tpu_custom_call.1} parent=5 // pred_check
        %p244 = pneg %p243
      $region38: #{tpu_custom_call.1} parent=5 // pred_check_branch
        %246 = sbr.rel (%p244) target = $region40
      $region39: #{tpu_custom_call.1} parent=5 // pred_region
        // Predicated region
        $region41: #{tpu_custom_call.1} parent=39 // pred_check
          %p247 = pneg %p50
        $region42: #{tpu_custom_call.1} parent=39 // pred_check_branch
          %249 = sbr.rel (%p247) target = $region44
        $region43: #{tpu_custom_call.1} parent=39 // pred_region
          %p250 = scmp.lt.s32.totalorder %s23, 1
          %s251 = scalar_select %p250, %s23, 1
          %p252 = scmp.lt.s32.totalorder %s24, 0
          %s253 = scalar_select %p252, %s24, 0
          %s254 = sadd.s32 %s253, %s251
          %s255 = smul.addr %s254, 8
          %s256 = scalar_lea.vmem %s0, %s255
        $region44: #{tpu_custom_call.1} parent=39 // pred_fallthru
          _
      $region40: #{tpu_custom_call.1} parent=5 // pred_fallthru
        _
      %p257 = scmp.le.s32.totalorder 1, %s16
      %p258 = scmp.lt.s32.totalorder %s16, 3
      %p259 = pnand %p257, %p258
      %p260 = pneg %p259
      // Predicated region
      $region45: #{tpu_custom_call.1} parent=5 // pred_check
        _
      $region46: #{tpu_custom_call.1} parent=5 // pred_check_branch
        %262 = sbr.rel (%p259) target = $region48
      $region47: #{tpu_custom_call.1} parent=5 // pred_region
        %s263 = ssub.s32 %s16, 1
        %p264 = scmp.lt.s32.totalorder %s25, 1
        %s265 = scalar_select %p264, %s25, 1
        %p266 = scmp.lt.s32.totalorder %s26, 0
        %s267 = scalar_select %p266, %s26, 0
        %s268 = sadd.s32 %s267, %s265
        %s269 = smul.addr %s268, 8
        %s270 = scalar_lea.vmem %s0, %s269
        %p271 = pneg %p56
        %p272 = pneg %p53
        %p273 = pneg %p77
        %p274 = pneg %p74
        %p275 = pneg %p98
        %p276 = pneg %p95
        %p277 = pneg %p119
        %p278 = pneg %p116
        %p279 = pneg %p140
        %p280 = pneg %p137
        %p281 = pneg %p161
        %p282 = pneg %p158
        %p283 = pneg %p182
        %p284 = pneg %p179
        %p285 = pneg %p210
        %p286 = pneg %p207
        %s287 = sand.u32 %s197, 1
        %s288 = scalar_lea.sflag [#allocation3], %s287
        %s289 = sand.u32 %s197, 1
        %s290 = smul.addr %s289, 16
        %s291 = scalar_lea.vmem [#allocation2], %s290
        %p292 = scmp.lt.s32.totalorder %s25, 1
        %s293 = scalar_select %p292, %s25, 1
        %p294 = scmp.lt.s32.totalorder %s26, 0
        %s295 = scalar_select %p294, %s26, 0
        %s296 = sadd.s32 %s295, %s293
        %s297 = smul.addr %s296, 8
        %s298 = scalar_lea.vmem %s0, %s297
        %v299 = vld [vmem:[%s298] sm:$0xff]
        %v300 = vld [vmem:[%s1] sm:$0xff]
        %v301 = vld [vmem:[%s1 + $0x8] sm:$0xff]
        %v302 = vld [vmem:[%s1 + $0x10] sm:$0xff]
        %vm303 = vcmask 64512
        %v305 = vsel %vm303, %v300, 0
        %v308 = vsel %vm303, %v301, 0
        %v311 = vsel %vm303, %v302, 0
        %313 = vmatprep.subr.mxu0 0.0
        %314 = vmatpush1.msra.mxu0 %v299
        %315 = vmatprep.subr.mxu0 0.0
        %316 = vmatpush1.msra.mxu0 0.0
        %317 = vmatprep.subr.mxu0 0.0
        %318 = vmatpush1.msra.mxu0 0.0
        %319 = vmatprep.subr.mxu0 0.0
        %320 = vmatpush1.msra.mxu0 0.0
        %321 = vmatprep.subr.mxu0 0.0
        %322 = vmatpush1.msra.mxu0 0.0
        %323 = vmatprep.subr.mxu0 0.0
        %324 = vmatpush1.msra.mxu0 0.0
        %325 = vmatprep.subr.mxu0 0.0
        %326 = vmatpush1.msra.mxu0 0.0
        %327 = vmatprep.subr.mxu0 0.0
        %328 = vmatpush1.msra.mxu0 0.0
        %329 = vmatprep.subr.mxu0 0.0
        %330 = vmatpush1.msra.mxu0 0.0
        %331 = vmatprep.subr.mxu0 0.0
        %332 = vmatpush1.msra.mxu0 0.0
        %333 = vmatprep.subr.mxu0 0.0
        %334 = vmatpush1.msra.mxu0 0.0
        %335 = vmatprep.subr.mxu0 0.0
        %336 = vmatpush1.msra.mxu0 0.0
        %337 = vmatprep.subr.mxu0 0.0
        %338 = vmatpush1.msra.mxu0 0.0
        %339 = vmatprep.subr.mxu0 0.0
        %340 = vmatpush1.msra.mxu0 0.0
        %341 = vmatprep.subr.mxu0 0.0
        %342 = vmatpush1.msra.mxu0 0.0
        %343 = vmatprep.subr.mxu0 0.0
        %344 = vmatpush1.msra.mxu0 0.0
        %345 = vmatprep.subr.mxu0 0.0
        %346 = vmatpush1.msra.mxu0 0.0
        %347 = vmatprep.subr.mxu0 0.0
        %348 = vmatpush1.msra.mxu0 0.0
        %349 = vmatprep.subr.mxu0 0.0
        %350 = vmatpush1.msra.mxu0 0.0
        %351 = vmatprep.subr.mxu0 0.0
        %352 = vmatpush1.msra.mxu0 0.0
        %353 = vmatprep.subr.mxu0 0.0
        %354 = vmatpush1.msra.mxu0 0.0
        %355 = vmatprep.subr.mxu0 0.0
        %356 = vmatpush1.msra.mxu0 0.0
        %357 = vmatprep.subr.mxu0 0.0
        %358 = vmatpush1.msra.mxu0 0.0
        %359 = vmatprep.subr.mxu0 0.0
        %360 = vmatpush1.msra.mxu0 0.0
        %361 = vmatprep.subr.mxu0 0.0
        %362 = vmatpush1.msra.mxu0 0.0
        %363 = vmatprep.subr.mxu0 0.0
        %364 = vmatpush1.msra.mxu0 0.0
        %365 = vmatprep.subr.mxu0 0.0
        %366 = vmatpush1.msra.mxu0 0.0
        %367 = vmatprep.subr.mxu0 0.0
        %368 = vmatpush1.msra.mxu0 0.0
        %369 = vmatprep.subr.mxu0 0.0
        %370 = vmatpush1.msra.mxu0 0.0
        %371 = vmatprep.subr.mxu0 0.0
        %372 = vmatpush1.msra.mxu0 0.0
        %373 = vmatprep.subr.mxu0 0.0
        %374 = vmatpush1.msra.mxu0 0.0
        %375 = vmatprep.subr.mxu0 0.0
        %376 = vmatpush1.msra.mxu0 0.0
        %377 = vmatprep.mubr.f32.mxu0 0.0
        %378 = vmatmul.mubr.f32.gmra.mrb[0].mxu0 %v305
        %v379 = vpop.f32.mrb[0].mxu0
        %v380 = vadd.f32 0.0, %v379
        %v381 = vpop.f32.mrb[0].mxu0
        %382 = vmatprep.mubr.f32.mxu0 0.0
        %383 = vmatmul.mubr.f32.gmra.mrb[0].mxu0 %v308
        %v384 = vpop.f32.mrb[0].mxu0
        %v385 = vadd.f32 0.0, %v384
        %v386 = vpop.f32.mrb[0].mxu0
        %387 = vmatprep.mubr.f32.mxu0 0.0
        %388 = vmatmul.mubr.f32.gmra.mrb[0].mxu0 %v311
        %v389 = vpop.f32.mrb[0].mxu0
        %v390 = vadd.f32 0.0, %v389
        %v391 = vpop.f32.mrb[0].mxu0
        %392 = vdwg.mxu0
        %v393 = vld [vmem:[%s2] sm:$0xff]
        %395 = vset.pattern.permute.xlu0 0
        %396 = vperm.xlu0 %395, %v393
        %v397 = vpop.permute.xlu0 %396
        %v399 = vmul.f32 %v390, %v397
        %v400 = vld [vmem:[%s3] sm:$0xff]
        %402 = vset.pattern.permute.xlu0 0
        %403 = vperm.xlu0 %402, %v400
        %v404 = vpop.permute.xlu0 %403
        %v406 = vadd.f32 %v399, %v404
        %v407 = vmax.f32 %v406, 0.0
        %v408 = vld [vmem:[%s4] sm:$0xff]
        %v409 = vld [vmem:[%s4 + $0x8] sm:$0xff]
        %v411 = vsel %vm303, %v408, 0
        %v414 = vsel %vm303, %v409, 0
        %416 = vmatprep.subr.mxu0 0.0
        %417 = vmatpush1.msra.mxu0 %v407
        %418 = vmatprep.subr.mxu0 0.0
        %419 = vmatpush1.msra.mxu0 0.0
        %420 = vmatprep.subr.mxu0 0.0
        %421 = vmatpush1.msra.mxu0 0.0
        %422 = vmatprep.subr.mxu0 0.0
        %423 = vmatpush1.msra.mxu0 0.0
        %424 = vmatprep.subr.mxu0 0.0
        %425 = vmatpush1.msra.mxu0 0.0
        %426 = vmatprep.subr.mxu0 0.0
        %427 = vmatpush1.msra.mxu0 0.0
        %428 = vmatprep.subr.mxu0 0.0
        %429 = vmatpush1.msra.mxu0 0.0
        %430 = vmatprep.subr.mxu0 0.0
        %431 = vmatpush1.msra.mxu0 0.0
        %432 = vmatprep.subr.mxu0 0.0
        %433 = vmatpush1.msra.mxu0 0.0
        %434 = vmatprep.subr.mxu0 0.0
        %435 = vmatpush1.msra.mxu0 0.0
        %436 = vmatprep.subr.mxu0 0.0
        %437 = vmatpush1.msra.mxu0 0.0
        %438 = vmatprep.subr.mxu0 0.0
        %439 = vmatpush1.msra.mxu0 0.0
        %440 = vmatprep.subr.mxu0 0.0
        %441 = vmatpush1.msra.mxu0 0.0
        %442 = vmatprep.subr.mxu0 0.0
        %443 = vmatpush1.msra.mxu0 0.0
        %444 = vmatprep.subr.mxu0 0.0
        %445 = vmatpush1.msra.mxu0 0.0
        %446 = vmatprep.subr.mxu0 0.0
        %447 = vmatpush1.msra.mxu0 0.0
        %448 = vmatprep.subr.mxu0 0.0
        %449 = vmatpush1.msra.mxu0 0.0
        %450 = vmatprep.subr.mxu0 0.0
        %451 = vmatpush1.msra.mxu0 0.0
        %452 = vmatprep.subr.mxu0 0.0
        %453 = vmatpush1.msra.mxu0 0.0
        %454 = vmatprep.subr.mxu0 0.0
        %455 = vmatpush1.msra.mxu0 0.0
        %456 = vmatprep.subr.mxu0 0.0
        %457 = vmatpush1.msra.mxu0 0.0
        %458 = vmatprep.subr.mxu0 0.0
        %459 = vmatpush1.msra.mxu0 0.0
        %460 = vmatprep.subr.mxu0 0.0
        %461 = vmatpush1.msra.mxu0 0.0
        %462 = vmatprep.subr.mxu0 0.0
        %463 = vmatpush1.msra.mxu0 0.0
        %464 = vmatprep.subr.mxu0 0.0
        %465 = vmatpush1.msra.mxu0 0.0
        %466 = vmatprep.subr.mxu0 0.0
        %467 = vmatpush1.msra.mxu0 0.0
        %468 = vmatprep.subr.mxu0 0.0
        %469 = vmatpush1.msra.mxu0 0.0
        %470 = vmatprep.subr.mxu0 0.0
        %471 = vmatpush1.msra.mxu0 0.0
        %472 = vmatprep.subr.mxu0 0.0
        %473 = vmatpush1.msra.mxu0 0.0
        %474 = vmatprep.subr.mxu0 0.0
        %475 = vmatpush1.msra.mxu0 0.0
        %476 = vmatprep.subr.mxu0 0.0
        %477 = vmatpush1.msra.mxu0 0.0
        %478 = vmatprep.subr.mxu0 0.0
        %479 = vmatpush1.msra.mxu0 0.0
        %480 = vmatprep.mubr.f32.mxu0 0.0
        %481 = vmatmul.mubr.f32.gmra.mrb[0].mxu0 %v411
        %v482 = vpop.f32.mrb[0].mxu0
        %v483 = vadd.f32 0.0, %v482
        %v484 = vpop.f32.mrb[0].mxu0
        %485 = vmatprep.mubr.f32.mxu0 0.0
        %486 = vmatmul.mubr.f32.gmra.mrb[0].mxu0 %v414
        %v487 = vpop.f32.mrb[0].mxu0
        %v488 = vadd.f32 0.0, %v487
        %v489 = vpop.f32.mrb[0].mxu0
        %490 = vdwg.mxu0
        %v491 = vld [vmem:[%s5] sm:$0xff]
        %v492 = vld [vmem:[%s5 + $0x8] sm:$0xff]
        %494 = vset.pattern.permute.xlu0 0
        %495 = vperm.xlu0 %494, %v491
        %v496 = vpop.permute.xlu0 %495
        %499 = vset.pattern.permute.xlu0 0
        %500 = vperm.xlu0 %499, %v492
        %v501 = vpop.permute.xlu0 %500
        %v503 = vmul.f32 %v483, %v496
        %v504 = vmul.f32 %v488, %v501
        %v505 = vadd.f32 %v380, %v503
        %v506 = vadd.f32 %v385, %v504
        %v507 = vld [vmem:[%s6] sm:$0xff]
        %v508 = vld [vmem:[%s6 + $0x8] sm:$0xff]
        %510 = vset.pattern.permute.xlu0 0
        %511 = vperm.xlu0 %510, %v507
        %v512 = vpop.permute.xlu0 %511
        %515 = vset.pattern.permute.xlu0 0
        %516 = vperm.xlu0 %515, %v508
        %v517 = vpop.permute.xlu0 %516
        %v519 = vadd.f32 %v505, %v512
        %v520 = vadd.f32 %v506, %v517
        %v521 = vmax.f32 %v519, 0.0
        %v522 = vmax.f32 %v520, 0.0
        %523 = vst [vmem:[%s291] sm:$0xff] %v521
        %524 = vst [vmem:[%s291 + $0x8] sm:$0xff] %v522
        %s525 = sand.u32 %s197, 1
        %s526 = scalar_lea.sflag [#allocation3], %s525
        %s527 = sand.u32 %s197, 1
        %s528 = smul.addr %s527, 16
        %s529 = scalar_lea.vmem [#allocation2], %s528
        // Predicated region
        $region49: #{tpu_custom_call.1} parent=47 // pred_check
          %p530 = pneg %p207
        $region50: #{tpu_custom_call.1} parent=47 // pred_check_branch
          %532 = sbr.rel (%p530) target = $region52
        $region51: #{tpu_custom_call.1} parent=47 // pred_region
          %s534 = ssub.s32 256, 256
          %535 = vsyncadd %s526, %s534
          %s536 = smul.addr %s25, 2
          %s537 = sadd.s32 %s26, %s536
          %s538 = smul.addr %s537, 128
          %s539 = scalar_lea.hbm %s7, %s538
          %s540 = sshll.u32 %s529, 4
          %s541 = int_to_ptr.vmem [resolvable:$true] %s540
          %546 = dma.vmem_to_hbm [thread:$0]  %s541, 256, %s539, %s526, 128, 128, 8
        $region52: #{tpu_custom_call.1} parent=47 // pred_fallthru
          _
      $region48: #{tpu_custom_call.1} parent=5 // pred_fallthru
        _
      %p547 = scmp.le.s32.totalorder 2, %s16
      // Predicated region
      $region53: #{tpu_custom_call.1} parent=5 // pred_check
        %p548 = pneg %p547
      $region54: #{tpu_custom_call.1} parent=5 // pred_check_branch
        %550 = sbr.rel (%p548) target = $region56
      $region55: #{tpu_custom_call.1} parent=5 // pred_region
        %s551 = ssub.s32 %s16, 2
        // Predicated region
        $region57: #{tpu_custom_call.1} parent=55 // pred_check
          %p552 = pneg %p213
        $region58: #{tpu_custom_call.1} parent=55 // pred_check_branch
          %554 = sbr.rel (%p552) target = $region60
        $region59: #{tpu_custom_call.1} parent=55 // pred_region
          %s555 = sand.u32 %s198, 1
          %s556 = scalar_lea.sflag [#allocation3], %s555
          %s557 = sand.u32 %s198, 1
          %s558 = smul.addr %s557, 16
          %s559 = scalar_lea.vmem [#allocation2], %s558
          %560 = dma.done %s556, 256
        $region60: #{tpu_custom_call.1} parent=55 // pred_fallthru
          _
      $region56: #{tpu_custom_call.1} parent=5 // pred_fallthru
        _
    $region6: #{tpu_custom_call.1} parent=1 // loop_footer
      %s20 = sadd.s32 1, %s16
    $region7: #{tpu_custom_call.1} parent=1 // loop_footer_branch
      %15 = sbr.rel target = $region3
    $region8: #{tpu_custom_call.1} parent=1 // loop_exit
      _
    %561 = vsyncpa [#allocation3], 1
    %s562 = scalar_lea.sflag [#allocation3], 1
    %563 = vsyncpa %s562, 1

</llo_original>
